<compile_context>
chip_gen: v5e
topology: v5e:2x2
jax: 0.10.0
libtpu: 0.0.40
codegen_flags: <defaults>
</compile_context>

<pallas_src>
import functools

import jax
import jax.numpy as jnp
from jax import lax
from jax.experimental import pallas as pl
from jax.experimental.pallas import tpu as pltpu


def _wtl_kernel(pred_ref, side_ref, price_ref, out_ref, acc_ref,
                *, inv_temperature, apply_temperature, batch_size, block_b,
                blocks_per_core):
    c = pl.program_id(0)   # TensorCore split ("parallel")
    i = pl.program_id(1)   # batch-block reduction axis ("arbitrary")

    @pl.when(i == 0)
    def _():
        acc_ref[...] = jnp.zeros_like(acc_ref)

    preds = pred_ref[...].astype(jnp.float32)                     # (TB, C)
    if apply_temperature:
        preds = preds * inv_temperature
    side = side_ref[...]                                          # (TB, 2) f32
    tgt = side[:, 0:1].astype(jnp.int32)                          # (TB, 1)
    tweet = side[:, 1:2]                                          # (TB, 1)
    price = price_ref[...].astype(jnp.float32)                    # (TB, T)

    TB, C = preds.shape

    # --- per-sample cross entropy (numerically stable log-softmax NLL) ------
    m = jnp.max(preds, axis=-1, keepdims=True)                    # (TB, 1)
    z = preds - m                                                 # (TB, C)
    lse = jnp.log(jnp.sum(jnp.exp(z), axis=-1, keepdims=True))    # (TB, 1)
    class_ids = lax.broadcasted_iota(jnp.int32, (TB, C), 1)       # (TB, C)
    # TODO(synk): out-of-range / negative target ids silently give loss -> lse
    # instead of raising like PyTorch F.cross_entropy.
    tgt_logit = jnp.sum(jnp.where(class_ids == tgt, z, 0.0),
                        axis=-1, keepdims=True)                   # (TB, 1)
    loss = lse - tgt_logit                                        # (TB, 1)

    # --- mask rows past the true batch size (ragged last block / clamped
    #     duplicate blocks). Must mask loss too: garbage edge data may be
    #     NaN/Inf and NaN*0 would poison the accumulator. --------------------
    row0 = (c * blocks_per_core + i) * block_b
    row = row0 + lax.broadcasted_iota(jnp.int32, (TB, 1), 0)
    valid = row < batch_size                                      # (TB, 1) bool
    zero = jnp.zeros_like(loss)

    loss = jnp.where(valid, loss, zero)
    tw_raw = jnp.where(valid, 1.0 / (tweet + 1.0), zero)          # (TB, 1)
    pw_raw = jnp.where(valid,
                       jnp.mean(jnp.abs(price), axis=-1, keepdims=True),
                       zero)                                      # (TB, 1)

    # --- pack 4 partial-sum columns, one cross-sublane reduction per step ---
    cols = jnp.concatenate(
        [tw_raw, pw_raw, loss * tw_raw, loss * pw_raw], axis=-1)  # (TB, 4)
    acc_ref[...] += jnp.sum(cols, axis=0, keepdims=True)          # (1, 4)

    @pl.when(i == pl.num_programs(1) - 1)
    def _():
        out_ref[0, 0] = acc_ref[0, 0]
        out_ref[0, 1] = acc_ref[0, 1]
        out_ref[0, 2] = acc_ref[0, 2]
        out_ref[0, 3] = acc_ref[0, 3]


def weighted_temporal_loss(predictions, targets, tweet_counts, price_changes,
                           alpha=0.5, temperature=1.0, block_b=4096):
    """Pallas implementation of WeightedTemporalLoss.forward (returns scalar)."""
    B, C = predictions.shape
    T = price_changes.shape[1]

    # Pack the two per-sample scalars into one (B, 2) f32 side array.
    side = jnp.concatenate(
        [targets.reshape(B, 1).astype(jnp.float32),
         tweet_counts.reshape(B, 1).astype(jnp.float32)], axis=-1)

    def _round_up(x, m):
        return -(-x // m) * m

    # VMEM-aware batch tile: double-buffered, lane-padded per-row footprint.
    p_item = jnp.dtype(predictions.dtype).itemsize
    pc_item = jnp.dtype(price_changes.dtype).itemsize
    row_bytes = 2 * (p_item * _round_up(C, 128)
                     + pc_item * _round_up(T, 128)
                     + 4 * 128)                       # packed (TB, 2) side tile
    vmem_budget = 24 * 1024 * 1024                    # safe on v5e/v6e/v7x
    tb_cap = max(8, (vmem_budget // row_bytes) // 8 * 8)
    TB = max(8, min(int(block_b), tb_cap, _round_up(B, 8)))
    TB = _round_up(TB, 8)

    nblocks = -(-B // TB)
    NC = 2 if nblocks >= 2 else 1     # v7x: 2 TensorCores; harmless on v5e/v6e
    bpc = -(-nblocks // NC)

    def bmap(c, i):
        # Clamp so steps past the last block simply re-read it; those rows are
        # fully masked in-kernel via the absolute (unclamped) row index.
        return (jnp.minimum(c * bpc + i, nblocks - 1), 0)

    kernel = functools.partial(
        _wtl_kernel,
        inv_temperature=1.0 / float(temperature),
        apply_temperature=(float(temperature) != 1.0),
        batch_size=B,
        block_b=TB,
        blocks_per_core=bpc,
    )

    cost = pl.CostEstimate(
        flops=int(B * (6 * C + 2 * T + 16)),
        transcendentals=int(B * (C + 1)),
        bytes_accessed=int(B * C * p_item + B * T * pc_item + B * 2 * 4
                           + NC * 16),
    )

    partials = pl.pallas_call(
        kernel,
        out_shape=jax.ShapeDtypeStruct((NC, 4), jnp.float32),
        grid=(NC, bpc),
        in_specs=[
            pl.BlockSpec((TB, C), bmap),
            pl.BlockSpec((TB, 2), bmap),
            pl.BlockSpec((TB, T), bmap),
        ],
        out_specs=pl.BlockSpec((1, 4), lambda c, i: (c, 0),
                               memory_space=pltpu.MemorySpace.SMEM),
        scratch_shapes=[pltpu.VMEM((1, 4), jnp.float32)],
        compiler_params=pltpu.CompilerParams(
            dimension_semantics=("parallel", "arbitrary"),
            vmem_limit_bytes=32 * 1024 * 1024),
        cost_estimate=cost,
    )(predictions, side, price_changes)

    # Tiny final combine (4 adds + 2 divides) in plain JAX.
    s = jnp.sum(partials, axis=0)
    return (alpha * s[2] / s[0]
            + (1.0 - alpha) * s[3] / (s[1] + 1e-8))


def _reference(predictions, targets, tweet_counts, price_changes,
               alpha=0.5, temperature=1.0):
    """Plain-JAX reference mirroring the PyTorch module (for verification)."""
    tw = 1.0 / (tweet_counts + 1.0)
    tw = tw / tw.sum()
    pw = jnp.abs(price_changes).mean(axis=1)
    pw = pw / (pw.sum() + 1e-8)
    w = alpha * tw.reshape(-1) + (1.0 - alpha) * pw.reshape(-1)
    logits = predictions / temperature
    logp = jax.nn.log_softmax(logits, axis=-1)
    loss = -jnp.take_along_axis(logp, targets[:, None], axis=-1)[:, 0]
    return (loss * w).sum()


if __name__ == "__main__":
    B, C, T = 8, 16, 8  # batch, num classes, price time steps

    key = jax.random.PRNGKey(0)
    k1, k2, k3, k4 = jax.random.split(key, 4)
    predictions = jax.random.normal(k1, (B, C), dtype=jnp.float32)
    targets = jax.random.randint(k2, (B,), 0, C, dtype=jnp.int32)
    tweet_counts = jax.random.randint(k3, (B,), 0, 50).astype(jnp.float32)
    price_changes = jax.random.normal(k4, (B, T), dtype=jnp.float32)

    out = weighted_temporal_loss(predictions, targets, tweet_counts,
                                 price_changes, alpha=0.5, temperature=1.0)
    out = jax.block_until_ready(out)

    ref = _reference(predictions, targets, tweet_counts, price_changes,
                     alpha=0.5, temperature=1.0)
    assert jnp.allclose(out, ref, rtol=1e-5, atol=1e-5), (out, ref)

    print("KERNEL_OK")
</pallas_src>

<mosaic_0001>
module attributes {stable_mosaic.version = 11 : i64} {
  func.func @_wtl_kernel(%arg0: i32, %arg1: i32, %arg2: memref<8x16xf32, #tpu.memory_space<vmem>>, %arg3: memref<8x2xf32, #tpu.memory_space<vmem>>, %arg4: memref<8x8xf32, #tpu.memory_space<vmem>>, %arg5: memref<1x4xf32, #tpu.memory_space<smem>>, %arg6: memref<1x4xf32, #tpu.memory_space<vmem>>) attributes {dimension_semantics = [#tpu.dimension_semantics<parallel>, #tpu.dimension_semantics<arbitrary>], iteration_bounds = array<i64: 1, 1>, scalar_prefetch = 0 : i64, scratch_operands = 1 : i64, tpu.core_type = #tpu.core_type<tc>, window_params = [{transform_indices = @transform_0, window_bounds = array<i64: 8, 16>}, {transform_indices = @transform_1, window_bounds = array<i64: 8, 2>}, {transform_indices = @transform_2, window_bounds = array<i64: 8, 8>}, {transform_indices = @transform_3, window_bounds = array<i64: 1, 4>}]} {
    %c0_i32 = arith.constant 0 : i32
    %0 = arith.cmpi eq, %arg1, %c0_i32 : i32
    %1 = arith.extui %0 : i1 to i32
    %c0_i32_0 = arith.constant 0 : i32
    %2 = arith.cmpi ne, %1, %c0_i32_0 : i32
    scf.if %2 {
      %cst_22 = arith.constant 0.000000e+00 : f32
      %57 = vector.broadcast %cst_22 : f32 to vector<1x4xf32>
      %c0_23 = arith.constant 0 : index
      %c0_24 = arith.constant 0 : index
      %58 = vector.load %arg6[%c0_23, %c0_24] : memref<1x4xf32, #tpu.memory_space<vmem>>, vector<1x4xf32>
      tpu.vector_store %arg6[%c0_23, %c0_24], %57 {strides = array<i32>} : memref<1x4xf32, #tpu.memory_space<vmem>>, vector<1x4xf32>,
    } else {
    }
    %c0 = arith.constant 0 : index
    %c0_1 = arith.constant 0 : index
    %3 = vector.load %arg2[%c0, %c0_1] : memref<8x16xf32, #tpu.memory_space<vmem>>, vector<8x16xf32>
    %c0_2 = arith.constant 0 : index
    %c0_3 = arith.constant 0 : index
    %4 = vector.load %arg3[%c0_2, %c0_3] : memref<8x2xf32, #tpu.memory_space<vmem>>, vector<8x2xf32>
    %5 = vector.extract_strided_slice %4 {offsets = [0, 0], sizes = [8, 1], strides = [1, 1]} : vector<8x2xf32> to vector<8x1xf32>
    %6 = arith.fptosi %5 : vector<8x1xf32> to vector<8x1xi32>
    %7 = vector.extract_strided_slice %4 {offsets = [0, 1], sizes = [8, 1], strides = [1, 1]} : vector<8x2xf32> to vector<8x1xf32>
    %c0_4 = arith.constant 0 : index
    %c0_5 = arith.constant 0 : index
    %8 = vector.load %arg4[%c0_4, %c0_5] : memref<8x8xf32, #tpu.memory_space<vmem>>, vector<8x8xf32>
    %cst = arith.constant dense<0xFF800000> : vector<8xf32>
    %9 = vector.multi_reduction <maximumf>, %3, %cst [1] : vector<8x16xf32> to vector<8xf32>
    %10 = vector.shape_cast %9 : vector<8xf32> to vector<8x1xf32>
    %11 = vector.broadcast %10 : vector<8x1xf32> to vector<8x16xf32>
    %12 = arith.subf %3, %11 : vector<8x16xf32>
    %13 = math.exp %12 : vector<8x16xf32>
    %cst_6 = arith.constant dense<0.000000e+00> : vector<8xf32>
    %14 = vector.multi_reduction <add>, %13, %cst_6 [1] : vector<8x16xf32> to vector<8xf32>
    %15 = vector.shape_cast %14 : vector<8xf32> to vector<8x1xf32>
    %16 = math.log %15 : vector<8x1xf32>
    %17 = tpu.iota {dimensions = array<i32: 1>} : vector<8x16xi32>
    %18 = vector.broadcast %6 : vector<8x1xi32> to vector<8x16xi32>
    %19 = arith.cmpi eq, %17, %18 : vector<8x16xi32>
    %cst_7 = arith.constant 0.000000e+00 : f32
    %20 = vector.broadcast %cst_7 : f32 to vector<8x16xf32>
    %21 = arith.select %19, %12, %20 : vector<8x16xi1>, vector<8x16xf32>
    %cst_8 = arith.constant dense<0.000000e+00> : vector<8xf32>
    %22 = vector.multi_reduction <add>, %21, %cst_8 [1] : vector<8x16xf32> to vector<8xf32>
    %23 = vector.shape_cast %22 : vector<8xf32> to vector<8x1xf32>
    %24 = arith.subf %16, %23 : vector<8x1xf32>
    %c1_i32 = arith.constant 1 : i32
    %25 = arith.muli %arg0, %c1_i32 : i32
    %26 = arith.addi %25, %arg1 : i32
    %c8_i32 = arith.constant 8 : i32
    %27 = arith.muli %26, %c8_i32 : i32
    %28 = tpu.iota {dimensions = array<i32: 0>} : vector<8x1xi32>
    %29 = vector.broadcast %27 : i32 to vector<8x1xi32>
    %30 = arith.addi %29, %28 : vector<8x1xi32>
    %c8_i32_9 = arith.constant 8 : i32
    %31 = vector.broadcast %c8_i32_9 : i32 to vector<8x1xi32>
    %32 = arith.cmpi slt, %30, %31 : vector<8x1xi32>
    %cst_10 = arith.constant 0.000000e+00 : f32
    %33 = vector.broadcast %cst_10 : f32 to vector<8x1xf32>
    %34 = arith.select %32, %24, %33 : vector<8x1xi1>, vector<8x1xf32>
    %cst_11 = arith.constant 1.000000e+00 : f32
    %35 = vector.broadcast %cst_11 : f32 to vector<8x1xf32>
    %36 = arith.addf %7, %35 : vector<8x1xf32>
    %cst_12 = arith.constant 1.000000e+00 : f32
    %37 = vector.broadcast %cst_12 : f32 to vector<8x1xf32>
    %38 = arith.divf %37, %36 : vector<8x1xf32>
    %39 = arith.select %32, %38, %33 : vector<8x1xi1>, vector<8x1xf32>
    %40 = math.absf %8 : vector<8x8xf32>
    %cst_13 = arith.constant dense<0.000000e+00> : vector<8xf32>
    %41 = vector.multi_reduction <add>, %40, %cst_13 [1] : vector<8x8xf32> to vector<8xf32>
    %42 = vector.shape_cast %41 : vector<8xf32> to vector<8x1xf32>
    %cst_14 = arith.constant 8.000000e+00 : f32
    %43 = vector.broadcast %cst_14 : f32 to vector<8x1xf32>
    %44 = arith.divf %42, %43 : vector<8x1xf32>
    %45 = arith.select %32, %44, %33 : vector<8x1xi1>, vector<8x1xf32>
    %46 = arith.mulf %34, %39 : vector<8x1xf32>
    %47 = arith.mulf %34, %45 : vector<8x1xf32>
    %48 = tpu.concatenate %39, %45, %46, %47 in 1 : vector<8x1xf32>, vector<8x1xf32>, vector<8x1xf32>, vector<8x1xf32> -> vector<8x4xf32>
    %c0_15 = arith.constant 0 : index
    %c0_16 = arith.constant 0 : index
    %49 = vector.load %arg6[%c0_15, %c0_16] : memref<1x4xf32, #tpu.memory_space<vmem>>, vector<1x4xf32>
    %cst_17 = arith.constant dense<0.000000e+00> : vector<4xf32>
    %50 = vector.multi_reduction <add>, %48, %cst_17 [0] : vector<8x4xf32> to vector<4xf32>
    %51 = vector.shape_cast %50 : vector<4xf32> to vector<1x4xf32>
    %52 = arith.addf %49, %51 : vector<1x4xf32>
    %c0_18 = arith.constant 0 : index
    %c0_19 = arith.constant 0 : index
    %53 = vector.load %arg6[%c0_18, %c0_19] : memref<1x4xf32, #tpu.memory_space<vmem>>, vector<1x4xf32>
    tpu.vector_store %arg6[%c0_18, %c0_19], %52 {strides = array<i32>} : memref<1x4xf32, #tpu.memory_space<vmem>>, vector<1x4xf32>,
    %c0_i32_20 = arith.constant 0 : i32
    %54 = arith.cmpi eq, %arg1, %c0_i32_20 : i32
    %55 = arith.extui %54 : i1 to i32
    %c0_i32_21 = arith.constant 0 : i32
    %56 = arith.cmpi ne, %55, %c0_i32_21 : i32
    scf.if %56 {
      %c0_22 = arith.constant 0 : index
      %c0_23 = arith.constant 0 : index
      %57 = vector.load %arg6[%c0_22, %c0_23] : memref<1x4xf32, #tpu.memory_space<vmem>>, vector<1x1xf32>
      %58 = vector.extract %57[0, 0] : f32 from vector<1x1xf32>
      %c0_24 = arith.constant 0 : index
      %c0_25 = arith.constant 0 : index
      %59 = memref.load %arg5[%c0_24, %c0_25] : memref<1x4xf32, #tpu.memory_space<smem>>
      memref.store %58, %arg5[%c0_24, %c0_25] : memref<1x4xf32, #tpu.memory_space<smem>>
      %c0_26 = arith.constant 0 : index
      %c1 = arith.constant 1 : index
      %60 = vector.load %arg6[%c0_26, %c1] : memref<1x4xf32, #tpu.memory_space<vmem>>, vector<1x1xf32>
      %61 = vector.extract %60[0, 0] : f32 from vector<1x1xf32>
      %c0_27 = arith.constant 0 : index
      %c1_28 = arith.constant 1 : index
      %62 = memref.load %arg5[%c0_27, %c1_28] : memref<1x4xf32, #tpu.memory_space<smem>>
      memref.store %61, %arg5[%c0_27, %c1_28] : memref<1x4xf32, #tpu.memory_space<smem>>
      %c0_29 = arith.constant 0 : index
      %c2 = arith.constant 2 : index
      %63 = vector.load %arg6[%c0_29, %c2] : memref<1x4xf32, #tpu.memory_space<vmem>>, vector<1x1xf32>
      %64 = vector.extract %63[0, 0] : f32 from vector<1x1xf32>
      %c0_30 = arith.constant 0 : index
      %c2_31 = arith.constant 2 : index
      %65 = memref.load %arg5[%c0_30, %c2_31] : memref<1x4xf32, #tpu.memory_space<smem>>
      memref.store %64, %arg5[%c0_30, %c2_31] : memref<1x4xf32, #tpu.memory_space<smem>>
      %c0_32 = arith.constant 0 : index
      %c3 = arith.constant 3 : index
      %66 = vector.load %arg6[%c0_32, %c3] : memref<1x4xf32, #tpu.memory_space<vmem>>, vector<1x1xf32>
      %67 = vector.extract %66[0, 0] : f32 from vector<1x1xf32>
      %c0_33 = arith.constant 0 : index
      %c3_34 = arith.constant 3 : index
      %68 = memref.load %arg5[%c0_33, %c3_34] : memref<1x4xf32, #tpu.memory_space<smem>>
      memref.store %67, %arg5[%c0_33, %c3_34] : memref<1x4xf32, #tpu.memory_space<smem>>
    } else {
    }
    return
  }
  func.func @transform_0(%arg0: i32, %arg1: i32) -> (i32, i32) {
    %c1_i32 = arith.constant 1 : i32
    %0 = arith.muli %arg0, %c1_i32 : i32
    %1 = arith.addi %0, %arg1 : i32
    %c0_i32 = arith.constant 0 : i32
    %2 = arith.minsi %1, %c0_i32 : i32
    %c0_i32_0 = arith.constant 0 : i32
    %c0_i32_1 = arith.constant 0 : i32
    return %2, %c0_i32_0 : i32, i32
  }
  func.func @transform_1(%arg0: i32, %arg1: i32) -> (i32, i32) {
    %c1_i32 = arith.constant 1 : i32
    %0 = arith.muli %arg0, %c1_i32 : i32
    %1 = arith.addi %0, %arg1 : i32
    %c0_i32 = arith.constant 0 : i32
    %2 = arith.minsi %1, %c0_i32 : i32
    %c0_i32_0 = arith.constant 0 : i32
    %c0_i32_1 = arith.constant 0 : i32
    return %2, %c0_i32_0 : i32, i32
  }
  func.func @transform_2(%arg0: i32, %arg1: i32) -> (i32, i32) {
    %c1_i32 = arith.constant 1 : i32
    %0 = arith.muli %arg0, %c1_i32 : i32
    %1 = arith.addi %0, %arg1 : i32
    %c0_i32 = arith.constant 0 : i32
    %2 = arith.minsi %1, %c0_i32 : i32
    %c0_i32_0 = arith.constant 0 : i32
    %c0_i32_1 = arith.constant 0 : i32
    return %2, %c0_i32_0 : i32, i32
  }
  func.func @transform_3(%arg0: i32, %arg1: i32) -> (i32, i32) {
    %c0_i32 = arith.constant 0 : i32
    %c0_i32_0 = arith.constant 0 : i32
    return %arg0, %c0_i32 : i32, i32
  }
}

</mosaic_0001>

<llo_original>
// kernel: tpu_custom_call.1
$region0: #{tpu_custom_call.1}
  #allocation0 [shape = 'u32[]', space=smem, size = 0x4, offset = 0x4, fixed_abs, tag = 'smem constant byte address 0x4 - core index']
  #allocation1 [shape = 'u32[72,128]{1,0:T(1,128)}', space=vmem, size = 0x9000, scoped, tag = 'internal scratch']
  #allocation2 [shape = 'f32[1,4]{1,0:T(1,128)}', space=vmem, size = 0x200, scoped, tag = 'scratch operand']
  %s0 = inlined_call_operand.vmem [shape: f32[8,16], index: 0, kind: input, shape index: {}]
  %s1 = inlined_call_operand.vmem [shape: f32[8,2], index: 1, kind: input, shape index: {}]
  %s2 = inlined_call_operand.hbm [shape: f32[8,8], index: 2, kind: input, shape index: {}]
  %s3 = inlined_call_operand.hbm [shape: f32[1,4], index: 3, kind: output, shape index: {}]
  %s4 = sld [smem:[#allocation0]]
  $region34: #{tpu_custom_call.1} parent=0
    _
  %s6 = ssub.s32 1, %s4
  %s7 = scalar_select 0, %s6, %s4
  $region1: #{tpu_custom_call.1} parent=0
    #allocation3 [shape = 'u8[4096]{0}', space=vmem, size = 0x1000, scoped, tag = 'input window, operand 2, single buffered']
    #allocation4 [shape = 's32[1]{0}', space=sflag, size = 0x4, scoped, tag = 'scoped memory for tpu_custom_call.1']
    #allocation5 [shape = 's32[1]{0}', space=sflag, size = 0x4, scoped, tag = 'scoped memory for tpu_custom_call.1']
    #allocation6 [shape = 'u8[512]{0}', space=smem, size = 0x200, scoped, tag = 'output window, operand 0, single buffered']
    %8 = vsyncpa [#allocation4], 0
    %9 = vsyncpa [#allocation5], 0
    // Predicated region
    $region2: #{tpu_custom_call.1} parent=1 // pred_check
      _
    $region3: #{tpu_custom_call.1} parent=1 // pred_check_branch
      %11 = sbr.rel (0) target = $region5
    $region4: #{tpu_custom_call.1} parent=1 // pred_region
      %s12 = sadd.s32 0, 0
      %p13 = scmp.lt.s32.totalorder %s12, 0
      %s14 = scalar_select %p13, %s12, 0
      %p15 = scmp.lt.s32.totalorder %s14, 0
      %s16 = scalar_select %p15, %s14, 0
      %s17 = smul.addr %s16, 8
      %s18 = scalar_lea.vmem %s0, %s17
      %s19 = sadd.s32 0, 0
      %p20 = scmp.lt.s32.totalorder %s19, 0
      %s21 = scalar_select %p20, %s19, 0
    $region5: #{tpu_custom_call.1} parent=1 // pred_fallthru
      _
    // Predicated region
    $region6: #{tpu_custom_call.1} parent=1 // pred_check
      _
    $region7: #{tpu_custom_call.1} parent=1 // pred_check_branch
      %23 = sbr.rel (0) target = $region9
    $region8: #{tpu_custom_call.1} parent=1 // pred_region
      %s24 = sadd.s32 0, 0
      %p25 = scmp.lt.s32.totalorder %s24, 0
      %s26 = scalar_select %p25, %s24, 0
      %p27 = scmp.lt.s32.totalorder %s26, 0
      %s28 = scalar_select %p27, %s26, 0
      %s29 = smul.addr %s28, 8
      %s30 = scalar_lea.vmem %s1, %s29
      %s31 = sadd.s32 0, 0
      %p32 = scmp.lt.s32.totalorder %s31, 0
      %s33 = scalar_select %p32, %s31, 0
    $region9: #{tpu_custom_call.1} parent=1 // pred_fallthru
      _
    // Predicated region
    $region10: #{tpu_custom_call.1} parent=1 // pred_check
      _
    $region11: #{tpu_custom_call.1} parent=1 // pred_check_branch
      %35 = sbr.rel (0) target = $region13
    $region12: #{tpu_custom_call.1} parent=1 // pred_region
      %s36 = sadd.s32 0, 0
      %p37 = scmp.lt.s32.totalorder %s36, 0
      %s38 = scalar_select %p37, %s36, 0
      %40 = vsyncadd [#allocation4], 0
      %s41 = smul.addr %s38, 8
      %s42 = scalar_lea.hbm %s2, %s41
      %s44 = sshll.u32 %s42, 4
      %s45 = int_to_ptr.hbm [resolvable:$true] %s44
      %s46 = sshll.u32 [#allocation3], 4
      %s47 = int_to_ptr.vmem [resolvable:$true] %s46
      %49 = dma.hbm_to_vmem [thread:$0]  %s45, 128, %s47, [#allocation4]
    $region13: #{tpu_custom_call.1} parent=1 // pred_fallthru
      _
    // Predicated region
    $region14: #{tpu_custom_call.1} parent=1 // pred_check
      _
    $region15: #{tpu_custom_call.1} parent=1 // pred_check_branch
      %51 = sbr.rel (0) target = $region17
    $region16: #{tpu_custom_call.1} parent=1 // pred_region
      %53 = dma.done [#allocation4], 128
    $region17: #{tpu_custom_call.1} parent=1 // pred_fallthru
      _
    %s54 = sadd.s32 0, 0
    %p55 = scmp.lt.s32.totalorder %s54, 0
    %s56 = scalar_select %p55, %s54, 0
    %p57 = scmp.lt.s32.totalorder %s56, 0
    %s58 = scalar_select %p57, %s56, 0
    %s59 = smul.addr %s58, 8
    %s60 = scalar_lea.vmem %s0, %s59
    %s61 = sadd.s32 0, 0
    %p62 = scmp.lt.s32.totalorder %s61, 0
    %s63 = scalar_select %p62, %s61, 0
    %p64 = scmp.lt.s32.totalorder %s63, 0
    %s65 = scalar_select %p64, %s63, 0
    %s66 = smul.addr %s65, 8
    %s67 = scalar_lea.vmem %s1, %s66
    %s68 = sadd.s32 0, 0
    %p69 = scmp.lt.s32.totalorder %s68, 0
    %s70 = scalar_select %p69, %s68, 0
    %p71 = scmp.lt.s32.totalorder %s70, 0
    %s72 = scalar_select %p71, %s70, 0
    %s73 = smul.addr %s72, 8
    %s74 = scalar_lea.vmem %s0, %s73
    %s75 = sadd.s32 0, 0
    %p76 = scmp.lt.s32.totalorder %s75, 0
    %s77 = scalar_select %p76, %s75, 0
    %s78 = sadd.s32 0, 0
    %p79 = scmp.lt.s32.totalorder %s78, 0
    %s80 = scalar_select %p79, %s78, 0
    %p81 = scmp.lt.s32.totalorder %s80, 0
    %s82 = scalar_select %p81, %s80, 0
    %s83 = smul.addr %s82, 8
    %s84 = scalar_lea.vmem %s1, %s83
    %s85 = sadd.s32 0, 0
    %p86 = scmp.lt.s32.totalorder %s85, 0
    %s87 = scalar_select %p86, %s85, 0
    %s88 = sadd.s32 0, 0
    %p89 = scmp.lt.s32.totalorder %s88, 0
    %s90 = scalar_select %p89, %s88, 0
    %p91 = scmp.eq.s32.totalorder 0, 0
    // Predicated region
    $region18: #{tpu_custom_call.1} parent=1 // pred_check
      %p92 = pneg %p91
    $region19: #{tpu_custom_call.1} parent=1 // pred_check_branch
      %94 = sbr.rel (%p92) target = $region21
    $region20: #{tpu_custom_call.1} parent=1 // pred_region
      %vm95 = vcmask 24576
      %96 = vst.msk [vmem:[#allocation2] sm:$0x1] %vm95, 0.0
    $region21: #{tpu_custom_call.1} parent=1 // pred_fallthru
      _
    %v97 = vld [vmem:[%s74] sm:$0xff]
    %v98 = vld [vmem:[%s84] sm:$0xff]
    %v99 = vcvt.f32.s32.to.zero.pseudo %v98
    %v100 = vld [vmem:[#allocation3] sm:$0xff]
    %vm101 = vcmask 130048
    %v102 = vsel %vm101, %v97, -inf
    %103 = vmax.xlane.f32.xlu0 %v102
    %v104 = vpop.xlane.xlu0 %103
    %v105 = vsub.f32 %v97, %v104
    %v106 = vmul.f32 %v105, 1.442695
    %v107 = vpow.pop %v106
    %v108 = vsel %vm101, %v107, 0.0
    %109 = vadd.xlane.f32.xlu0 %v108
    %v110 = vpop.xlane.xlu0 %109
    %v111 = vlog2.pop %v110
    %v112 = vmul.f32 %v111, 0.6931472
    %v113 = vlaneseq
    %v114 = vand.u32 %v113, 127
    %115 = vset.pattern.permute.xlu0 0
    %116 = vperm.xlu0 %115, %v99
    %v117 = vpop.permute.xlu0 %116
    %vm118 = vcmp.eq.s32.totalorder %v114, %v117
    %v119 = vsel %vm118, %v105, 0.0
    %v120 = vsel %vm101, %v119, 0.0
    %121 = vadd.xlane.f32.xlu0 %v120
    %v122 = vpop.xlane.xlu0 %121
    %v123 = vsub.f32 %v112, %v122
    %s124 = sadd.s32 0, 0
    %s125 = smul.u32 %s124, 8
    %v126 = vlaneseq
    %v127 = vshrl.u32 %v126, 7
    %v128 = vstv %s125
    %v129 = vadd.s32 %v128, %v127
    %vm130 = vcmp.lt.s32.totalorder %v129, 8
    %v131 = vsel %vm130, %v123, 0.0
    %v132 = vadd.f32 %v98, 1.0
    %v133 = vrcp.pop %v132
    %v134 = vmul.f32 %v132, %v133
    %v135 = vsub.f32 1.0, %v134
    %v136 = vmul.f32 %v133, %v135
    %v137 = vadd.f32 %v133, %v136
    %vm138 = vweird.f32 %v132
    %vm139 = vweird.f32 %v133
    %vm140 = vmor %vm138, %vm139
    %v141 = vsel %vm140, %v133, %v137
    %v142 = vand.u32 2147483647, %v132
    %vm143 = vcmp.eq.f32.partialorder %v142, 8.507059e+37
    %v144 = vand.u32 %v132, 2147483648
    %v145 = vor.u32 1.1754944e-38, %v144
    %v146 = vsel %vm143, %v145, %v141
    %v147 = vmul.f32 1.0, %v146
    %v148 = vsel %vm130, %v147, 0.0
    %v149 = vand.u32 2147483647, %v100
    %vm150 = vcmask 64512
    %v151 = vsel %vm150, %v149, 0.0
    %152 = vadd.xlane.f32.xlu0 %v151
    %v153 = vpop.xlane.xlu0 %152
    %v154 = vrcp.pop 8.0
    %v155 = vmul.f32 8.0, %v154
    %v156 = vsub.f32 1.0, %v155
    %v157 = vmul.f32 %v154, %v156
    %v158 = vadd.f32 %v154, %v157
    %vm159 = vweird.f32 %v154
    %v160 = vsel %vm159, %v154, %v158
    %v161 = vmul.f32 %v153, %v160
    %v162 = vsel %vm130, %v161, 0.0
    %v163 = vmul.f32 %v131, %v148
    %v164 = vmul.f32 %v131, %v162
    %166 = vrot.lane.b32.xlu0 %v148, 127
    %v167 = vpop.permute.xlu0 %166
    %170 = vrot.lane.b32.xlu0 %v163, 1
    %v171 = vpop.permute.xlu0 %170
    %vm173 = vcmask 7168
    %v174 = vsel %vm173, %v167, %v162
    %vm175 = vcmask 15360
    %v176 = vsel %vm175, %v174, %v171
    %vm177 = vcmask 23552
    %v178 = vsel %vm177, %v176, %v164
    %v179 = vld [vmem:[#allocation2] sm:$0x1]
    %vm180 = vcmask 31744
    %v181 = vsel %vm180, %v178, 0.0
    %v182 = vrot.slane %v181, 4
    %v183 = vadd.f32 %v181, %v182
    %v184 = vrot.slane %v183, 2
    %v185 = vadd.f32 %v183, %v184
    %v186 = vrot.slane %v185, 1
    %v187 = vadd.f32 %v185, %v186
    %v188 = vadd.f32 %v179, %v187
    %vm189 = vcmask 24576
    %190 = vst.msk [vmem:[#allocation2] sm:$0x1] %vm189, %v188
    // Predicated region
    $region22: #{tpu_custom_call.1} parent=1 // pred_check
      %p191 = pneg %p91
    $region23: #{tpu_custom_call.1} parent=1 // pred_check_branch
      %193 = sbr.rel (%p191) target = $region25
    $region24: #{tpu_custom_call.1} parent=1 // pred_region
      %v194 = vld [vmem:[#allocation2] sm:$0x1]
      %s195 = vtos %v194
      %s196 = scalar_lea.smem [#allocation6], 0
      %197 = sst [smem:[%s196]] %s195
      %v198 = vld [vmem:[#allocation2] sm:$0x1]
      %200 = vrot.lane.b32.xlu0 %v198, 127
      %v201 = vpop.permute.xlu0 %200
      %s203 = vtos %v201
      %s204 = scalar_lea.smem [#allocation6], 1
      %205 = sst [smem:[%s204]] %s203
      %v206 = vld [vmem:[#allocation2] sm:$0x1]
      %208 = vrot.lane.b32.xlu0 %v206, 126
      %v209 = vpop.permute.xlu0 %208
      %s211 = vtos %v209
      %s212 = scalar_lea.smem [#allocation6], 2
      %213 = sst [smem:[%s212]] %s211
      %v214 = vld [vmem:[#allocation2] sm:$0x1]
      %216 = vrot.lane.b32.xlu0 %v214, 125
      %v217 = vpop.permute.xlu0 %216
      %s219 = vtos %v217
      %s220 = scalar_lea.smem [#allocation6], 3
      %221 = sst [smem:[%s220]] %s219
    $region25: #{tpu_custom_call.1} parent=1 // pred_fallthru
      _
    // Predicated region
    $region26: #{tpu_custom_call.1} parent=1 // pred_check
      _
    $region27: #{tpu_custom_call.1} parent=1 // pred_check_branch
      %223 = sbr.rel (0) target = $region29
    $region28: #{tpu_custom_call.1} parent=1 // pred_region
      %225 = vsyncadd [#allocation5], 0
      %s227 = sshll.u32 %s3, 4
      %s228 = int_to_ptr.hbm [resolvable:$true] %s227
      %230 = dma.smem_to_hbm [#allocation6], 16, %s228, [#allocation5]
    $region29: #{tpu_custom_call.1} parent=1 // pred_fallthru
      _
    // Predicated region
    $region30: #{tpu_custom_call.1} parent=1 // pred_check
      _
    $region31: #{tpu_custom_call.1} parent=1 // pred_check_branch
      %232 = sbr.rel (0) target = $region33
    $region32: #{tpu_custom_call.1} parent=1 // pred_region
      %234 = dma.done [#allocation5], 16
    $region33: #{tpu_custom_call.1} parent=1 // pred_fallthru
      _
    %235 = sfence
    %236 = vsyncpa [#allocation4], 1
    %237 = vsyncpa [#allocation5], 1

</llo_original>
